<compile_context>
chip_gen: v6e
topology: v6e:2x2x1
jax: 0.10.0
libtpu: 0.0.40
codegen_flags: <defaults>
</compile_context>

<pallas_src>
import jax
import jax.numpy as jnp
from jax import lax
from jax.experimental import pallas as pl
from jax.experimental.pallas import tpu as pltpu

SCA = 2  # fixed upscale factor in FFDNet


# --------------------------------------------------------------------------
# helpers
# --------------------------------------------------------------------------
def _largest_divisor_le(n, cap):
    for d in range(min(cap, n), 0, -1):
        if n % d == 0:
            return d
    return 1


def _pick_tiling(N, Cout, Hr, sub, row_bytes, budget, target_steps=8):
    """Pick (channels-per-block, rows-per-block).

    Priority: (1) reach >= target_steps grid steps (pipelining / 2-TC sharding),
    (2) maximize block bytes within `budget` (amortize ~0.35us/step overhead).
    """
    cb_cands = [d for d in range(min(Cout, 4), 0, -1) if Cout % d == 0]
    ht_cands = [d for d in range(Hr, 0, -1)
                if Hr % d == 0 and (d % sub == 0 or d == Hr)]
    best_key, best = None, (1, ht_cands[-1])
    for cb in cb_cands:
        for ht in ht_cands:
            bb = row_bytes * cb * ht
            if bb > budget:
                continue
            steps = N * (Cout // cb) * (Hr // ht)
            key = (min(steps, target_steps), bb)
            if best_key is None or key > best_key:
                best_key, best = key, (cb, ht)
    return best


# --------------------------------------------------------------------------
# kernels
# --------------------------------------------------------------------------
def _make_chunk_kernel(cb, Wc, n_chunks, W):
    """W >= 128: per W-chunk, even/odd output rows go to two 2*Wc column ranges
    of the (ht, 4W) output row; lane interleave via two K=Wc scatter dots."""
    unroll = (cb * n_chunks) <= 8

    def kernel(s_ref, x_ref, o_ref):
        # s_ref: (2, Wc, 2*Wc)   x_ref: (1, 4*cb, ht, W)   o_ref: (1, cb, ht, 4*W)
        s0 = s_ref[0, :, :]
        s1 = s_ref[1, :, :]

        def emit(cc, col):
            x0 = x_ref[0, 4 * cc + 0, :, pl.ds(col, Wc)]
            x1 = x_ref[0, 4 * cc + 1, :, pl.ds(col, Wc)]
            x2 = x_ref[0, 4 * cc + 2, :, pl.ds(col, Wc)]
            x3 = x_ref[0, 4 * cc + 3, :, pl.ds(col, Wc)]
            even = (jnp.dot(x0, s0, preferred_element_type=jnp.float32)
                    + jnp.dot(x1, s1, preferred_element_type=jnp.float32))
            odd = (jnp.dot(x2, s0, preferred_element_type=jnp.float32)
                   + jnp.dot(x3, s1, preferred_element_type=jnp.float32))
            o_ref[0, cc, :, pl.ds(2 * col, 2 * Wc)] = even.astype(o_ref.dtype)
            o_ref[0, cc, :, pl.ds(2 * W + 2 * col, 2 * Wc)] = odd.astype(o_ref.dtype)

        for cc in range(cb):                      # cb <= 4, small static unroll
            if unroll:
                for j in range(n_chunks):
                    emit(cc, j * Wc)
            else:
                def body(j, carry, cc=cc):
                    emit(cc, pl.multiple_of(j * Wc, Wc))
                    return carry
                lax.fori_loop(0, n_chunks, body, 0)

    return kernel


def _make_fold_kernel(cb):
    """W < 128: q rows folded into the lane dim; one (ht, 4*Lw) output tile is
    the sum of four K=Lw scatter dots (even/odd interleave baked into S)."""
    def kernel(s_ref, x_ref, o_ref):
        # s_ref: (4, Lw, 4*Lw)   x_ref: (1, 4*cb, ht, Lw)   o_ref: (1, cb, ht, 4*Lw)
        for cc in range(cb):                      # cb <= 4, small static unroll
            acc = jnp.dot(x_ref[0, 4 * cc + 0, :, :], s_ref[0, :, :],
                          preferred_element_type=jnp.float32)
            acc = acc + jnp.dot(x_ref[0, 4 * cc + 1, :, :], s_ref[1, :, :],
                                preferred_element_type=jnp.float32)
            acc = acc + jnp.dot(x_ref[0, 4 * cc + 2, :, :], s_ref[2, :, :],
                                preferred_element_type=jnp.float32)
            acc = acc + jnp.dot(x_ref[0, 4 * cc + 3, :, :], s_ref[3, :, :],
                                preferred_element_type=jnp.float32)
            o_ref[0, cc, :, :] = acc.astype(o_ref.dtype)

    return kernel


# --------------------------------------------------------------------------
# wrapper
# --------------------------------------------------------------------------
def upsample_features(x):
    """Pallas implementation of FFDNet's UpSampleFeatures forward."""
    N, Cin, H, W = x.shape
    assert Cin % (SCA * SCA) == 0, "channels must be divisible by 4"
    Cout = Cin // (SCA * SCA)
    # TODO(synk): integer dtypes would need a non-MXU path (v7x MXU is fp8-only).
    assert jnp.issubdtype(x.dtype, jnp.floating), "floating dtypes only"
    isz = x.dtype.itemsize
    sub = {4: 8, 2: 16, 1: 32}.get(isz, 8)        # sublane quantum per dtype

    # ---- lane geometry: fold small W into lanes, chunk large W ------------
    if W >= 128:
        mode = "chunk"
        q = 1
        Wc = _largest_divisor_le(W, 128)
        if Wc < 32 and W <= 256:                  # awkward (prime-ish) W: one chunk
            Wc = W
        Lrow = W
    else:
        mode = "fold"
        q = 1
        for d in range(H, 0, -1):                 # largest fold with q*W <= 128
            if H % d == 0 and d * W <= 128:
                q = d
                break
        Lrow = q * W
        Wc = Lrow
    Hr = H // q

    # ---- block / grid selection -------------------------------------------
    # single-copy (in + out) bytes per (out-channel, folded row); Pallas
    # double-buffers => ~2x at runtime, well under the 48 MiB scoped limit.
    budget = 8 * 1024 * 1024
    row_bytes = 8 * Lrow * isz
    cb, ht = _pick_tiling(N, Cout, Hr, sub, row_bytes, budget, target_steps=8)
    grid = (N, Cout // cb, Hr // ht)

    # ---- constant scatter operand (built once, VMEM-resident) -------------
    if mode == "chunk":
        wi = jnp.arange(Wc)
        S = jnp.zeros((2, Wc, 2 * Wc), x.dtype)
        S = S.at[0, wi, 2 * wi].set(1).at[1, wi, 2 * wi + 1].set(1)
        kernel = _make_chunk_kernel(cb, Wc, W // Wc, W)
        xv = x
    else:
        ki = jnp.arange(Lrow)
        hh, ww = ki // W, ki % W
        S = jnp.zeros((4, Lrow, 4 * Lrow), x.dtype)
        for p in range(4):                        # p = 2*i0 + i1 (FFDNet order)
            i0, i1 = p // 2, p % 2
            S = S.at[p, ki, 4 * W * hh + 2 * W * i0 + 2 * ww + i1].set(1)
        kernel = _make_fold_kernel(cb)
        # fold q rows into the lane dim (wrapper-side layout plumbing)
        xv = x.reshape(N, Cin, Hr, Lrow)

    y4 = pl.pallas_call(
        kernel,
        out_shape=jax.ShapeDtypeStruct((N, Cout, Hr, 4 * Lrow), x.dtype),
        grid_spec=pltpu.PrefetchScalarGridSpec(
            num_scalar_prefetch=0,
            grid=grid,
            in_specs=[
                # scatter matrices: constant block, stays resident in VMEM
                pl.BlockSpec(S.shape, lambda n, c, h: (0, 0, 0)),
                # 4*cb consecutive input channels, one row-tile, full row length
                pl.BlockSpec((1, 4 * cb, ht, Lrow), lambda n, c, h: (n, c, h, 0)),
            ],
            out_specs=pl.BlockSpec(
                (1, cb, ht, 4 * Lrow), lambda n, c, h: (n, c, h, 0)
            ),
        ),
        compiler_params=pltpu.CompilerParams(
            dimension_semantics=("parallel", "parallel", "parallel"),
            vmem_limit_bytes=48 * 1024 * 1024,
        ),
    )(S, xv)

    # (N, Cout, Hr, 4*Lrow) flattens in exactly output row-major order
    # -> contiguous merge to (N, Cout, 2H, 2W).
    return y4.reshape(N, Cout, SCA * H, SCA * W)


# --------------------------------------------------------------------------
# reference + demo
# --------------------------------------------------------------------------
def upsample_ref(x):
    """Pure-JAX reference matching the PyTorch UpSampleFeaturesFunction."""
    N, Cin, H, W = x.shape
    Cout = Cin // 4
    out = jnp.zeros((N, Cout, 2 * H, 2 * W), x.dtype)
    idxL = [(0, 0), (0, 1), (1, 0), (1, 1)]
    for idx, (i0, i1) in enumerate(idxL):
        out = out.at[:, :, i0::2, i1::2].set(x[:, idx::4, :, :])
    return out


if __name__ == "__main__":
    key = jax.random.PRNGKey(0)
    # N=2, Cin=16 (-> Cout=4), H=W=16  ==> output (2, 4, 32, 32)
    x = jax.random.normal(key, (2, 16, 16, 16), dtype=jnp.float32)

    y = upsample_features(x)
    y = jax.block_until_ready(y)

    y_ref = upsample_ref(x)
    assert y.shape == (2, 4, 32, 32), y.shape
    assert jnp.allclose(y, y_ref), "Pallas result does not match reference"

    print("KERNEL_OK")
</pallas_src>

<mosaic_0001>
module attributes {stable_mosaic.version = 11 : i64} {
  func.func @kernel(%arg0: i32, %arg1: i32, %arg2: i32, %arg3: memref<4x128x512xf32, #tpu.memory_space<vmem>>, %arg4: memref<1x4x2x128xf32, #tpu.memory_space<vmem>>, %arg5: memref<1x1x2x512xf32, #tpu.memory_space<vmem>>) attributes {dimension_semantics = [#tpu.dimension_semantics<parallel>, #tpu.dimension_semantics<parallel>, #tpu.dimension_semantics<parallel>], iteration_bounds = array<i64: 2, 4, 1>, scalar_prefetch = 0 : i64, scratch_operands = 0 : i64, tpu.core_type = #tpu.core_type<tc>, window_params = [{pipeline_mode = #tpu.pipeline_mode<synchronous>, transform_indices = @transform_0, window_bounds = array<i64: 4, 128, 512>}, {transform_indices = @transform_1, window_bounds = array<i64: 1, 4, 2, 128>}, {transform_indices = @transform_2, window_bounds = array<i64: 1, 1, 2, 512>}]} {
    %c0 = arith.constant 0 : index
    %c0_0 = arith.constant 0 : index
    %c0_1 = arith.constant 0 : index
    %c0_2 = arith.constant 0 : index
    %0 = vector.load %arg4[%c0, %c0_0, %c0_1, %c0_2] : memref<1x4x2x128xf32, #tpu.memory_space<vmem>>, vector<1x1x2x128xf32>
    %1 = vector.shape_cast %0 : vector<1x1x2x128xf32> to vector<2x128xf32>
    %c0_3 = arith.constant 0 : index
    %c0_4 = arith.constant 0 : index
    %c0_5 = arith.constant 0 : index
    %2 = vector.load %arg3[%c0_3, %c0_4, %c0_5] : memref<4x128x512xf32, #tpu.memory_space<vmem>>, vector<1x128x512xf32>
    %3 = vector.shape_cast %2 : vector<1x128x512xf32> to vector<128x512xf32>
    %cst = arith.constant dense<0.000000e+00> : vector<2x512xf32>
    %4 = tpu.matmul %1, %3, %cst {dimension_numbers = #tpu.dot_dimension_numbers<[1], [0], [0], [1], [0, 0, 1, 1], [], []>} : vector<2x128xf32>, vector<128x512xf32>, vector<2x512xf32> -> vector<2x512xf32>
    %c0_6 = arith.constant 0 : index
    %c1 = arith.constant 1 : index
    %c0_7 = arith.constant 0 : index
    %c0_8 = arith.constant 0 : index
    %5 = vector.load %arg4[%c0_6, %c1, %c0_7, %c0_8] : memref<1x4x2x128xf32, #tpu.memory_space<vmem>>, vector<1x1x2x128xf32>
    %6 = vector.shape_cast %5 : vector<1x1x2x128xf32> to vector<2x128xf32>
    %c1_9 = arith.constant 1 : index
    %c0_10 = arith.constant 0 : index
    %c0_11 = arith.constant 0 : index
    %7 = vector.load %arg3[%c1_9, %c0_10, %c0_11] : memref<4x128x512xf32, #tpu.memory_space<vmem>>, vector<1x128x512xf32>
    %8 = vector.shape_cast %7 : vector<1x128x512xf32> to vector<128x512xf32>
    %cst_12 = arith.constant dense<0.000000e+00> : vector<2x512xf32>
    %9 = tpu.matmul %6, %8, %cst_12 {dimension_numbers = #tpu.dot_dimension_numbers<[1], [0], [0], [1], [0, 0, 1, 1], [], []>} : vector<2x128xf32>, vector<128x512xf32>, vector<2x512xf32> -> vector<2x512xf32>
    %10 = arith.addf %4, %9 : vector<2x512xf32>
    %c0_13 = arith.constant 0 : index
    %c2 = arith.constant 2 : index
    %c0_14 = arith.constant 0 : index
    %c0_15 = arith.constant 0 : index
    %11 = vector.load %arg4[%c0_13, %c2, %c0_14, %c0_15] : memref<1x4x2x128xf32, #tpu.memory_space<vmem>>, vector<1x1x2x128xf32>
    %12 = vector.shape_cast %11 : vector<1x1x2x128xf32> to vector<2x128xf32>
    %c2_16 = arith.constant 2 : index
    %c0_17 = arith.constant 0 : index
    %c0_18 = arith.constant 0 : index
    %13 = vector.load %arg3[%c2_16, %c0_17, %c0_18] : memref<4x128x512xf32, #tpu.memory_space<vmem>>, vector<1x128x512xf32>
    %14 = vector.shape_cast %13 : vector<1x128x512xf32> to vector<128x512xf32>
    %cst_19 = arith.constant dense<0.000000e+00> : vector<2x512xf32>
    %15 = tpu.matmul %12, %14, %cst_19 {dimension_numbers = #tpu.dot_dimension_numbers<[1], [0], [0], [1], [0, 0, 1, 1], [], []>} : vector<2x128xf32>, vector<128x512xf32>, vector<2x512xf32> -> vector<2x512xf32>
    %16 = arith.addf %10, %15 : vector<2x512xf32>
    %c0_20 = arith.constant 0 : index
    %c3 = arith.constant 3 : index
    %c0_21 = arith.constant 0 : index
    %c0_22 = arith.constant 0 : index
    %17 = vector.load %arg4[%c0_20, %c3, %c0_21, %c0_22] : memref<1x4x2x128xf32, #tpu.memory_space<vmem>>, vector<1x1x2x128xf32>
    %18 = vector.shape_cast %17 : vector<1x1x2x128xf32> to vector<2x128xf32>
    %c3_23 = arith.constant 3 : index
    %c0_24 = arith.constant 0 : index
    %c0_25 = arith.constant 0 : index
    %19 = vector.load %arg3[%c3_23, %c0_24, %c0_25] : memref<4x128x512xf32, #tpu.memory_space<vmem>>, vector<1x128x512xf32>
    %20 = vector.shape_cast %19 : vector<1x128x512xf32> to vector<128x512xf32>
    %cst_26 = arith.constant dense<0.000000e+00> : vector<2x512xf32>
    %21 = tpu.matmul %18, %20, %cst_26 {dimension_numbers = #tpu.dot_dimension_numbers<[1], [0], [0], [1], [0, 0, 1, 1], [], []>} : vector<2x128xf32>, vector<128x512xf32>, vector<2x512xf32> -> vector<2x512xf32>
    %22 = arith.addf %16, %21 : vector<2x512xf32>
    %c0_27 = arith.constant 0 : index
    %c0_28 = arith.constant 0 : index
    %c0_29 = arith.constant 0 : index
    %c0_30 = arith.constant 0 : index
    %23 = vector.load %arg5[%c0_27, %c0_28, %c0_29, %c0_30] : memref<1x1x2x512xf32, #tpu.memory_space<vmem>>, vector<1x1x2x512xf32>
    %24 = vector.shape_cast %23 : vector<1x1x2x512xf32> to vector<2x512xf32>
    %25 = vector.shape_cast %22 : vector<2x512xf32> to vector<1x1x2x512xf32>
    tpu.vector_store %arg5[%c0_27, %c0_28, %c0_29, %c0_30], %25 {strides = array<i32>} : memref<1x1x2x512xf32, #tpu.memory_space<vmem>>, vector<1x1x2x512xf32>,
    return
  }
  func.func @transform_0(%arg0: i32, %arg1: i32, %arg2: i32) -> (i32, i32, i32) {
    %c0_i32 = arith.constant 0 : i32
    %c0_i32_0 = arith.constant 0 : i32
    %c0_i32_1 = arith.constant 0 : i32
    %c0_i32_2 = arith.constant 0 : i32
    return %c0_i32, %c0_i32_0, %c0_i32_1 : i32, i32, i32
  }
  func.func @transform_1(%arg0: i32, %arg1: i32, %arg2: i32) -> (i32, i32, i32, i32) {
    %c0_i32 = arith.constant 0 : i32
    %c0_i32_0 = arith.constant 0 : i32
    return %arg0, %arg1, %arg2, %c0_i32 : i32, i32, i32, i32
  }
  func.func @transform_2(%arg0: i32, %arg1: i32, %arg2: i32) -> (i32, i32, i32, i32) {
    %c0_i32 = arith.constant 0 : i32
    %c0_i32_0 = arith.constant 0 : i32
    return %arg0, %arg1, %arg2, %c0_i32 : i32, i32, i32, i32
  }
}

</mosaic_0001>

<llo_original>
// kernel: tpu_custom_call.1
$region0: #{tpu_custom_call.1}
  #allocation0 [shape = 'u32[]', space=smem, size = 0x4, offset = 0x4, fixed_abs, tag = 'smem constant byte address 0x4 - core index']
  #allocation1 [shape = 'u32[144,128]{1,0:T(1,128)}', space=vmem, size = 0x12000, scoped, tag = 'internal scratch']
  %s0 = inlined_call_operand.hbm [shape: f32[4,128,512], index: 0, kind: input, shape index: {}]
  %s1 = inlined_call_operand.hbm [shape: f32[2,16,2,128], index: 1, kind: input, shape index: {}]
  %s2 = inlined_call_operand.hbm [shape: f32[2,4,2,512], index: 2, kind: output, shape index: {}]
  %s3 = sld [smem:[#allocation0]]
  $region49: #{tpu_custom_call.1} parent=0
    _
  %s5 = ssub.s32 1, %s3
  %s6 = scalar_select 0, %s5, %s3
  $region1: #{tpu_custom_call.1} parent=0
    #allocation2 [shape = 'u8[1048576]{0}', space=vmem, size = 0x100000, scoped, tag = 'input window, operand 0, single buffered']
    #allocation3 [shape = 's32[2]{0}', space=sflag, size = 0x8, scoped, tag = 'scoped memory for tpu_custom_call.1']
    #allocation4 [shape = 's32[2]{0}', space=sflag, size = 0x8, scoped, tag = 'scoped memory for tpu_custom_call.1']
    #allocation5 [shape = 'u8[8192]{0}', space=vmem, size = 0x2000, scoped, tag = 'input window, operand 1']
    #allocation6 [shape = 's32[2]{0}', space=sflag, size = 0x8, scoped, tag = 'scoped memory for tpu_custom_call.1']
    #allocation7 [shape = 'u8[8192]{0}', space=vmem, size = 0x2000, scoped, tag = 'output window, operand 0']
    %7 = vsyncpa [#allocation3], 0
    %8 = vsyncpa [#allocation6], 0
    %s9 = scalar_lea.sflag [#allocation6], 1
    %10 = vsyncpa %s9, 0
    %11 = vsyncpa [#allocation4], 0
    %s12 = scalar_lea.sflag [#allocation4], 1
    %13 = vsyncpa %s12, 0
    loop: start=0, step=1, limit=10
    $region2: #{tpu_custom_call.1} parent=1 // loop_pre_header
      _
    $region3: #{tpu_custom_call.1} parent=1 // loop_header
      %s15 = sphi 0, %s19
      %p16 = scmp.ge.s32.totalorder %s15, 10
      %s22 = sphi 0, %s41
      %s23 = sphi 0, %s37
      %s24 = sphi 0, %s33
      %s25 = sphi 0, %s22
      %s26 = sphi 0, %s23
      %s27 = sphi 0, %s24
      %s28 = sphi 0, %s25
      %s29 = sphi 0, %s26
      %s30 = sphi 0, %s27
      %s42 = sphi 0, %s42
      %s44 = sphi 0, %s42
      %s45 = sphi 0, %s44
      %s59 = sphi 0, %s45
      %s69 = sphi 0, %s71
      %s72 = sphi 0, %s69
      %s73 = sphi 0, %s72
      %s89 = sphi 0, %s73
      %s99 = sphi 0, %s101
      %s102 = sphi 0, %s99
      %s103 = sphi 0, %s102
      %s119 = sphi 0, %s103
    $region4: #{tpu_custom_call.1} parent=1 // loop_header_branch
      %18 = sbr.rel (%p16) target = $region8
    $region5: #{tpu_custom_call.1} parent=1 // loop_body
      %s20 = ssub.s32 %s15, 1
      %s21 = ssub.s32 %s15, 2
      %s31 = sadd.s32 1, %s24
      %p32 = scmp.ge.s32.totalorder %s31, 1
      %s33 = scalar_select %p32, 0, %s31
      %s34 = sadd.s32 1, %s23
      %s35 = scalar_select %p32, %s34, %s23
      %p36 = scmp.ge.s32.totalorder %s35, 4
      %s37 = scalar_select %p36, 0, %s35
      %s38 = sadd.s32 1, %s22
      %s39 = scalar_select %p36, %s38, %s22
      %p40 = scmp.ge.s32.totalorder %s39, 2
      %s41 = scalar_select %p40, 0, %s39
      %s43 = sadd.s32 %s42, 1
      %p46 = scmp.eq.s32.totalorder %s15, 7
      %p47 = scmp.ne.s32.totalorder %s42, %s44
      %p48 = scmp.eq.s32.totalorder %s15, 0
      %p49 = por %p47, %p48
      %p50 = scmp.ne.s32.totalorder %s42, %s44
      %p51 = scmp.eq.s32.totalorder %s20, 7
      %p52 = por %p50, %p51
      %p53 = scmp.ne.s32.totalorder %s44, %s45
      %p54 = scmp.eq.s32.totalorder %s20, 0
      %p55 = por %p53, %p54
      %p56 = scmp.ne.s32.totalorder %s44, %s45
      %p57 = scmp.eq.s32.totalorder %s21, 7
      %p58 = por %p56, %p57
      %p60 = scmp.ne.s32.totalorder %s45, %s59
      %p61 = scmp.eq.s32.totalorder %s21, 0
      %p62 = por %p60, %p61
      %s63 = ssub.s32 %s22, %s41
      %s64 = ssub.s32 %s23, %s37
      %s65 = sor.u32 %s63, %s64
      %s66 = ssub.s32 %s24, %s33
      %s67 = sor.u32 %s65, %s66
      %p68 = scmp.eq.s32.totalorder %s67, 0
      %s70 = sadd.s32 %s69, 1
      %s71 = scalar_select %p68, %s69, %s70
      %p74 = pneg %p68
      %p75 = scmp.eq.s32.totalorder %s15, 7
      %p76 = por %p74, %p75
      %p77 = scmp.ne.s32.totalorder %s69, %s72
      %p78 = scmp.eq.s32.totalorder %s15, 0
      %p79 = por %p77, %p78
      %p80 = scmp.ne.s32.totalorder %s69, %s72
      %p81 = scmp.eq.s32.totalorder %s20, 7
      %p82 = por %p80, %p81
      %p83 = scmp.ne.s32.totalorder %s72, %s73
      %p84 = scmp.eq.s32.totalorder %s20, 0
      %p85 = por %p83, %p84
      %p86 = scmp.ne.s32.totalorder %s72, %s73
      %p87 = scmp.eq.s32.totalorder %s21, 7
      %p88 = por %p86, %p87
      %p90 = scmp.ne.s32.totalorder %s73, %s89
      %p91 = scmp.eq.s32.totalorder %s21, 0
      %p92 = por %p90, %p91
      %s93 = ssub.s32 %s22, %s41
      %s94 = ssub.s32 %s23, %s37
      %s95 = sor.u32 %s93, %s94
      %s96 = ssub.s32 %s24, %s33
      %s97 = sor.u32 %s95, %s96
      %p98 = scmp.eq.s32.totalorder %s97, 0
      %s100 = sadd.s32 %s99, 1
      %s101 = scalar_select %p98, %s99, %s100
      %p104 = pneg %p98
      %p105 = scmp.eq.s32.totalorder %s15, 7
      %p106 = por %p104, %p105
      %p107 = scmp.ne.s32.totalorder %s99, %s102
      %p108 = scmp.eq.s32.totalorder %s15, 0
      %p109 = por %p107, %p108
      %p110 = scmp.ne.s32.totalorder %s99, %s102
      %p111 = scmp.eq.s32.totalorder %s20, 7
      %p112 = por %p110, %p111
      %p113 = scmp.ne.s32.totalorder %s102, %s103
      %p114 = scmp.eq.s32.totalorder %s20, 0
      %p115 = por %p113, %p114
      %p116 = scmp.ne.s32.totalorder %s102, %s103
      %p117 = scmp.eq.s32.totalorder %s21, 7
      %p118 = por %p116, %p117
      %p120 = scmp.ne.s32.totalorder %s103, %s119
      %p121 = scmp.eq.s32.totalorder %s21, 0
      %p122 = por %p120, %p121
      %p123 = scmp.le.s32.totalorder 1, %s15
      %p124 = scmp.lt.s32.totalorder %s15, 9
      %p125 = pnand %p123, %p124
      %p126 = pneg %p125
      // Predicated region
      $region9: #{tpu_custom_call.1} parent=5 // pred_check
        _
      $region10: #{tpu_custom_call.1} parent=5 // pred_check_branch
        %128 = sbr.rel (%p125) target = $region12
      $region11: #{tpu_custom_call.1} parent=5 // pred_region
        %s129 = ssub.s32 %s15, 1
        // Predicated region
        $region13: #{tpu_custom_call.1} parent=11 // pred_check
          %p130 = pneg %p55
        $region14: #{tpu_custom_call.1} parent=11 // pred_check_branch
          %132 = sbr.rel (%p130) target = $region16
        $region15: #{tpu_custom_call.1} parent=11 // pred_region
          %s134 = ssub.s32 32768, 32768
          %135 = vsyncadd [#allocation3], %s134
          %s136 = sshll.u32 [#allocation2], 4
          %s137 = int_to_ptr.vmem [resolvable:$true] %s136
          %142 = dma.hbm_to_vmem [thread:$0]  %s0, 32768, %s137, [#allocation3], 512, 512, 32
        $region16: #{tpu_custom_call.1} parent=11 // pred_fallthru
          _
      $region12: #{tpu_custom_call.1} parent=5 // pred_fallthru
        _
      %p143 = scmp.lt.s32.totalorder %s15, 8
      // Predicated region
      $region17: #{tpu_custom_call.1} parent=5 // pred_check
        %p144 = pneg %p143
      $region18: #{tpu_custom_call.1} parent=5 // pred_check_branch
        %146 = sbr.rel (%p144) target = $region20
      $region19: #{tpu_custom_call.1} parent=5 // pred_region
        // Predicated region
        $region21: #{tpu_custom_call.1} parent=19 // pred_check
          %p147 = pneg %p79
        $region22: #{tpu_custom_call.1} parent=19 // pred_check_branch
          %149 = sbr.rel (%p147) target = $region24
        $region23: #{tpu_custom_call.1} parent=19 // pred_region
          %s150 = sand.u32 %s69, 1
          %s151 = scalar_lea.sflag [#allocation6], %s150
          %s152 = sand.u32 %s69, 1
          %s153 = smul.addr %s152, 8
          %s154 = scalar_lea.vmem [#allocation5], %s153
          %s155 = smul.u32 4, %s23
          %s157 = ssub.s32 128, 128
          %158 = vsyncadd %s151, %s157
          %s159 = sadd.s32 %s24, %s155
          %s160 = smul.addr %s22, 16
          %s161 = sadd.s32 %s159, %s160
          %s162 = smul.addr %s161, 32
          %s163 = scalar_lea.hbm %s1, %s162
          %s164 = sshll.u32 %s154, 4
          %s165 = int_to_ptr.vmem [resolvable:$true] %s164
          %170 = dma.hbm_to_vmem [thread:$0]  %s163, 128, %s165, %s151, 32, 32, 2
        $region24: #{tpu_custom_call.1} parent=19 // pred_fallthru
          _
      $region20: #{tpu_custom_call.1} parent=5 // pred_fallthru
        _
      %p171 = scmp.le.s32.totalorder 1, %s15
      %p172 = scmp.lt.s32.totalorder %s15, 9
      %p173 = pnand %p171, %p172
      %p174 = pneg %p173
      // Predicated region
      $region25: #{tpu_custom_call.1} parent=5 // pred_check
        _
      $region26: #{tpu_custom_call.1} parent=5 // pred_check_branch
        %176 = sbr.rel (%p173) target = $region28
      $region27: #{tpu_custom_call.1} parent=5 // pred_region
        %s177 = ssub.s32 %s15, 1
        // Predicated region
        $region29: #{tpu_custom_call.1} parent=27 // pred_check
          %p178 = pneg %p55
        $region30: #{tpu_custom_call.1} parent=27 // pred_check_branch
          %180 = sbr.rel (%p178) target = $region32
        $region31: #{tpu_custom_call.1} parent=27 // pred_region
          %181 = dma.done [#allocation3], 32768
        $region32: #{tpu_custom_call.1} parent=27 // pred_fallthru
          _
        %s182 = sand.u32 %s72, 1
        %s183 = scalar_lea.sflag [#allocation6], %s182
        %s184 = sand.u32 %s72, 1
        %s185 = smul.addr %s184, 8
        %s186 = scalar_lea.vmem [#allocation5], %s185
        // Predicated region
        $region33: #{tpu_custom_call.1} parent=27 // pred_check
          %p187 = pneg %p85
        $region34: #{tpu_custom_call.1} parent=27 // pred_check_branch
          %189 = sbr.rel (%p187) target = $region36
        $region35: #{tpu_custom_call.1} parent=27 // pred_region
          %190 = dma.done %s183, 128
        $region36: #{tpu_custom_call.1} parent=27 // pred_fallthru
          _
        %p191 = pneg %p55
        %p192 = pneg %p52
        %s193 = sand.u32 %s72, 1
        %s194 = scalar_lea.sflag [#allocation6], %s193
        %s195 = sand.u32 %s72, 1
        %s196 = smul.addr %s195, 8
        %s197 = scalar_lea.vmem [#allocation5], %s196
        %p198 = pneg %p85
        %p199 = pneg %p82
        %p200 = pneg %p115
        %p201 = pneg %p112
        %s202 = sand.u32 %s102, 1
        %s203 = scalar_lea.sflag [#allocation4], %s202
        %s204 = sand.u32 %s102, 1
        %s205 = smul.addr %s204, 8
        %s206 = scalar_lea.vmem [#allocation7], %s205
        %s207 = smul.u32 4, %s26
        %v208 = vld [vmem:[%s186] sm:$0x3]
        %v209 = vld [vmem:[#allocation2] sm:$0xff]
        %v210 = vld [vmem:[#allocation2 + $0x8] sm:$0xff]
        %v211 = vld [vmem:[#allocation2 + $0x10] sm:$0xff]
        %v212 = vld [vmem:[#allocation2 + $0x18] sm:$0xff]
        %v213 = vld [vmem:[#allocation2 + $0x20] sm:$0xff]
        %v214 = vld [vmem:[#allocation2 + $0x28] sm:$0xff]
        %v215 = vld [vmem:[#allocation2 + $0x30] sm:$0xff]
        %v216 = vld [vmem:[#allocation2 + $0x38] sm:$0xff]
        %v217 = vld [vmem:[#allocation2 + $0x40] sm:$0xff]
        %v218 = vld [vmem:[#allocation2 + $0x48] sm:$0xff]
        %v219 = vld [vmem:[#allocation2 + $0x50] sm:$0xff]
        %v220 = vld [vmem:[#allocation2 + $0x58] sm:$0xff]
        %v221 = vld [vmem:[#allocation2 + $0x60] sm:$0xff]
        %v222 = vld [vmem:[#allocation2 + $0x68] sm:$0xff]
        %v223 = vld [vmem:[#allocation2 + $0x70] sm:$0xff]
        %v224 = vld [vmem:[#allocation2 + $0x78] sm:$0xff]
        %v225 = vld [vmem:[#allocation2 + $0x80] sm:$0xff]
        %v226 = vld [vmem:[#allocation2 + $0x88] sm:$0xff]
        %v227 = vld [vmem:[#allocation2 + $0x90] sm:$0xff]
        %v228 = vld [vmem:[#allocation2 + $0x98] sm:$0xff]
        %v229 = vld [vmem:[#allocation2 + $0xa0] sm:$0xff]
        %v230 = vld [vmem:[#allocation2 + $0xa8] sm:$0xff]
        %v231 = vld [vmem:[#allocation2 + $0xb0] sm:$0xff]
        %v232 = vld [vmem:[#allocation2 + $0xb8] sm:$0xff]
        %v233 = vld [vmem:[#allocation2 + $0xc0] sm:$0xff]
        %v234 = vld [vmem:[#allocation2 + $0xc8] sm:$0xff]
        %v235 = vld [vmem:[#allocation2 + $0xd0] sm:$0xff]
        %v236 = vld [vmem:[#allocation2 + $0xd8] sm:$0xff]
        %v237 = vld [vmem:[#allocation2 + $0xe0] sm:$0xff]
        %v238 = vld [vmem:[#allocation2 + $0xe8] sm:$0xff]
        %v239 = vld [vmem:[#allocation2 + $0xf0] sm:$0xff]
        %v240 = vld [vmem:[#allocation2 + $0xf8] sm:$0xff]
        %v241 = vld [vmem:[#allocation2 + $0x100] sm:$0xff]
        %v242 = vld [vmem:[#allocation2 + $0x108] sm:$0xff]
        %v243 = vld [vmem:[#allocation2 + $0x110] sm:$0xff]
        %v244 = vld [vmem:[#allocation2 + $0x118] sm:$0xff]
        %v245 = vld [vmem:[#allocation2 + $0x120] sm:$0xff]
        %v246 = vld [vmem:[#allocation2 + $0x128] sm:$0xff]
        %v247 = vld [vmem:[#allocation2 + $0x130] sm:$0xff]
        %v248 = vld [vmem:[#allocation2 + $0x138] sm:$0xff]
        %v249 = vld [vmem:[#allocation2 + $0x140] sm:$0xff]
        %v250 = vld [vmem:[#allocation2 + $0x148] sm:$0xff]
        %v251 = vld [vmem:[#allocation2 + $0x150] sm:$0xff]
        %v252 = vld [vmem:[#allocation2 + $0x158] sm:$0xff]
        %v253 = vld [vmem:[#allocation2 + $0x160] sm:$0xff]
        %v254 = vld [vmem:[#allocation2 + $0x168] sm:$0xff]
        %v255 = vld [vmem:[#allocation2 + $0x170] sm:$0xff]
        %v256 = vld [vmem:[#allocation2 + $0x178] sm:$0xff]
        %v257 = vld [vmem:[#allocation2 + $0x180] sm:$0xff]
        %v258 = vld [vmem:[#allocation2 + $0x188] sm:$0xff]
        %v259 = vld [vmem:[#allocation2 + $0x190] sm:$0xff]
        %v260 = vld [vmem:[#allocation2 + $0x198] sm:$0xff]
        %v261 = vld [vmem:[#allocation2 + $0x1a0] sm:$0xff]
        %v262 = vld [vmem:[#allocation2 + $0x1a8] sm:$0xff]
        %v263 = vld [vmem:[#allocation2 + $0x1b0] sm:$0xff]
        %v264 = vld [vmem:[#allocation2 + $0x1b8] sm:$0xff]
        %v265 = vld [vmem:[#allocation2 + $0x1c0] sm:$0xff]
        %v266 = vld [vmem:[#allocation2 + $0x1c8] sm:$0xff]
        %v267 = vld [vmem:[#allocation2 + $0x1d0] sm:$0xff]
        %v268 = vld [vmem:[#allocation2 + $0x1d8] sm:$0xff]
        %v269 = vld [vmem:[#allocation2 + $0x1e0] sm:$0xff]
        %v270 = vld [vmem:[#allocation2 + $0x1e8] sm:$0xff]
        %v271 = vld [vmem:[#allocation2 + $0x1f0] sm:$0xff]
        %v272 = vld [vmem:[#allocation2 + $0x1f8] sm:$0xff]
        %s273 = scalar_lea.vmem %s186, 2 [#allocation5]
        %v274 = vld [vmem:[%s273] sm:$0x3]
        %s275 = scalar_lea.vmem [#allocation2], 512
        %v276 = vld [vmem:[%s275] sm:$0xff]
        %v277 = vld [vmem:[%s275 + $0x8] sm:$0xff]
        %v278 = vld [vmem:[%s275 + $0x10] sm:$0xff]
        %v279 = vld [vmem:[%s275 + $0x18] sm:$0xff]
        %v280 = vld [vmem:[%s275 + $0x20] sm:$0xff]
        %v281 = vld [vmem:[%s275 + $0x28] sm:$0xff]
        %v282 = vld [vmem:[%s275 + $0x30] sm:$0xff]
        %v283 = vld [vmem:[%s275 + $0x38] sm:$0xff]
        %v284 = vld [vmem:[%s275 + $0x40] sm:$0xff]
        %v285 = vld [vmem:[%s275 + $0x48] sm:$0xff]
        %v286 = vld [vmem:[%s275 + $0x50] sm:$0xff]
        %v287 = vld [vmem:[%s275 + $0x58] sm:$0xff]
        %v288 = vld [vmem:[%s275 + $0x60] sm:$0xff]
        %v289 = vld [vmem:[%s275 + $0x68] sm:$0xff]
        %v290 = vld [vmem:[%s275 + $0x70] sm:$0xff]
        %v291 = vld [vmem:[%s275 + $0x78] sm:$0xff]
        %v292 = vld [vmem:[%s275 + $0x80] sm:$0xff]
        %v293 = vld [vmem:[%s275 + $0x88] sm:$0xff]
        %v294 = vld [vmem:[%s275 + $0x90] sm:$0xff]
        %v295 = vld [vmem:[%s275 + $0x98] sm:$0xff]
        %v296 = vld [vmem:[%s275 + $0xa0] sm:$0xff]
        %v297 = vld [vmem:[%s275 + $0xa8] sm:$0xff]
        %v298 = vld [vmem:[%s275 + $0xb0] sm:$0xff]
        %v299 = vld [vmem:[%s275 + $0xb8] sm:$0xff]
        %v300 = vld [vmem:[%s275 + $0xc0] sm:$0xff]
        %v301 = vld [vmem:[%s275 + $0xc8] sm:$0xff]
        %v302 = vld [vmem:[%s275 + $0xd0] sm:$0xff]
        %v303 = vld [vmem:[%s275 + $0xd8] sm:$0xff]
        %v304 = vld [vmem:[%s275 + $0xe0] sm:$0xff]
        %v305 = vld [vmem:[%s275 + $0xe8] sm:$0xff]
        %v306 = vld [vmem:[%s275 + $0xf0] sm:$0xff]
        %v307 = vld [vmem:[%s275 + $0xf8] sm:$0xff]
        %v308 = vld [vmem:[%s275 + $0x100] sm:$0xff]
        %v309 = vld [vmem:[%s275 + $0x108] sm:$0xff]
        %v310 = vld [vmem:[%s275 + $0x110] sm:$0xff]
        %v311 = vld [vmem:[%s275 + $0x118] sm:$0xff]
        %v312 = vld [vmem:[%s275 + $0x120] sm:$0xff]
        %v313 = vld [vmem:[%s275 + $0x128] sm:$0xff]
        %v314 = vld [vmem:[%s275 + $0x130] sm:$0xff]
        %v315 = vld [vmem:[%s275 + $0x138] sm:$0xff]
        %v316 = vld [vmem:[%s275 + $0x140] sm:$0xff]
        %v317 = vld [vmem:[%s275 + $0x148] sm:$0xff]
        %v318 = vld [vmem:[%s275 + $0x150] sm:$0xff]
        %v319 = vld [vmem:[%s275 + $0x158] sm:$0xff]
        %v320 = vld [vmem:[%s275 + $0x160] sm:$0xff]
        %v321 = vld [vmem:[%s275 + $0x168] sm:$0xff]
        %v322 = vld [vmem:[%s275 + $0x170] sm:$0xff]
        %v323 = vld [vmem:[%s275 + $0x178] sm:$0xff]
        %v324 = vld [vmem:[%s275 + $0x180] sm:$0xff]
        %v325 = vld [vmem:[%s275 + $0x188] sm:$0xff]
        %v326 = vld [vmem:[%s275 + $0x190] sm:$0xff]
        %v327 = vld [vmem:[%s275 + $0x198] sm:$0xff]
        %v328 = vld [vmem:[%s275 + $0x1a0] sm:$0xff]
        %v329 = vld [vmem:[%s275 + $0x1a8] sm:$0xff]
        %v330 = vld [vmem:[%s275 + $0x1b0] sm:$0xff]
        %v331 = vld [vmem:[%s275 + $0x1b8] sm:$0xff]
        %v332 = vld [vmem:[%s275 + $0x1c0] sm:$0xff]
        %v333 = vld [vmem:[%s275 + $0x1c8] sm:$0xff]
        %v334 = vld [vmem:[%s275 + $0x1d0] sm:$0xff]
        %v335 = vld [vmem:[%s275 + $0x1d8] sm:$0xff]
        %v336 = vld [vmem:[%s275 + $0x1e0] sm:$0xff]
        %v337 = vld [vmem:[%s275 + $0x1e8] sm:$0xff]
        %v338 = vld [vmem:[%s275 + $0x1f0] sm:$0xff]
        %v339 = vld [vmem:[%s275 + $0x1f8] sm:$0xff]
        %340 = vmatprep.subr.mxu0 %v337
        %341 = vmatpush1.msra.mxu0 %v336
        %342 = vmatprep.subr.mxu0 %v333
        %343 = vmatpush1.msra.mxu0 %v332
        %344 = vmatprep.subr.mxu0 %v329
        %345 = vmatpush1.msra.mxu0 %v328
        %346 = vmatprep.subr.mxu0 %v325
        %347 = vmatpush1.msra.mxu0 %v324
        %348 = vmatprep.subr.mxu0 %v321
        %349 = vmatpush1.msra.mxu0 %v320
        %350 = vmatprep.subr.mxu0 %v317
        %351 = vmatpush1.msra.mxu0 %v316
        %352 = vmatprep.subr.mxu0 %v313
        %353 = vmatpush1.msra.mxu0 %v312
        %354 = vmatprep.subr.mxu0 %v309
        %355 = vmatpush1.msra.mxu0 %v308
        %356 = vmatprep.subr.mxu0 %v305
        %357 = vmatpush1.msra.mxu0 %v304
        %358 = vmatprep.subr.mxu0 %v301
        %359 = vmatpush1.msra.mxu0 %v300
        %360 = vmatprep.subr.mxu0 %v297
        %361 = vmatpush1.msra.mxu0 %v296
        %362 = vmatprep.subr.mxu0 %v293
        %363 = vmatpush1.msra.mxu0 %v292
        %364 = vmatprep.subr.mxu0 %v289
        %365 = vmatpush1.msra.mxu0 %v288
        %366 = vmatprep.subr.mxu0 %v285
        %367 = vmatpush1.msra.mxu0 %v284
        %368 = vmatprep.subr.mxu0 %v281
        %369 = vmatpush1.msra.mxu0 %v280
        %370 = vmatprep.subr.mxu0 %v277
        %371 = vmatpush1.msra.mxu0 %v276
        %372 = vmatprep.subr.mxu0 0.0
        %373 = vmatpush2.msra.mxu0 0.0
        %374 = vmatprep.subr.mxu0 0.0
        %375 = vmatpush2.msra.mxu0 0.0
        %376 = vmatprep.subr.mxu0 0.0
        %377 = vmatpush2.msra.mxu0 0.0
        %378 = vmatprep.subr.mxu0 0.0
        %379 = vmatpush2.msra.mxu0 0.0
        %380 = vmatprep.subr.mxu0 0.0
        %381 = vmatpush2.msra.mxu0 0.0
        %382 = vmatprep.subr.mxu0 0.0
        %383 = vmatpush2.msra.mxu0 0.0
        %384 = vmatprep.subr.mxu0 0.0
        %385 = vmatpush2.msra.mxu0 0.0
        %386 = vmatprep.subr.mxu0 0.0
        %387 = vmatpush2.msra.mxu0 0.0
        %388 = vmatprep.subr.mxu0 0.0
        %389 = vmatpush2.msra.mxu0 0.0
        %390 = vmatprep.subr.mxu0 0.0
        %391 = vmatpush2.msra.mxu0 0.0
        %392 = vmatprep.subr.mxu0 0.0
        %393 = vmatpush2.msra.mxu0 0.0
        %394 = vmatprep.subr.mxu0 0.0
        %395 = vmatpush2.msra.mxu0 0.0
        %396 = vmatprep.subr.mxu0 0.0
        %397 = vmatpush2.msra.mxu0 0.0
        %398 = vmatprep.subr.mxu0 0.0
        %399 = vmatpush2.msra.mxu0 0.0
        %400 = vmatprep.subr.mxu0 0.0
        %401 = vmatpush2.msra.mxu0 0.0
        %402 = vmatprep.subr.mxu0 0.0
        %403 = vmatpush2.msra.mxu0 0.0
        %404 = vmatprep.mubr.f32.mxu0 0.0
        %405 = vmatmul.mubr.f32.gmra.mxu0 %v274
        %v406 = vpop.f32.mrf.mxu0
        %v407 = vadd.f32 0.0, %v406
        %v408 = vpop.f32.mrf.mxu0
        %v409 = vadd.f32 0.0, %v408
        %410 = vdwg.mxu0
        %411 = vmatprep.subr.mxu0 %v339
        %412 = vmatpush1.msra.mxu0 %v338
        %413 = vmatprep.subr.mxu0 %v335
        %414 = vmatpush1.msra.mxu0 %v334
        %415 = vmatprep.subr.mxu0 %v331
        %416 = vmatpush1.msra.mxu0 %v330
        %417 = vmatprep.subr.mxu0 %v327
        %418 = vmatpush1.msra.mxu0 %v326
        %419 = vmatprep.subr.mxu0 %v323
        %420 = vmatpush1.msra.mxu0 %v322
        %421 = vmatprep.subr.mxu0 %v319
        %422 = vmatpush1.msra.mxu0 %v318
        %423 = vmatprep.subr.mxu0 %v315
        %424 = vmatpush1.msra.mxu0 %v314
        %425 = vmatprep.subr.mxu0 %v311
        %426 = vmatpush1.msra.mxu0 %v310
        %427 = vmatprep.subr.mxu0 %v307
        %428 = vmatpush1.msra.mxu0 %v306
        %429 = vmatprep.subr.mxu0 %v303
        %430 = vmatpush1.msra.mxu0 %v302
        %431 = vmatprep.subr.mxu0 %v299
        %432 = vmatpush1.msra.mxu0 %v298
        %433 = vmatprep.subr.mxu0 %v295
        %434 = vmatpush1.msra.mxu0 %v294
        %435 = vmatprep.subr.mxu0 %v291
        %436 = vmatpush1.msra.mxu0 %v290
        %437 = vmatprep.subr.mxu0 %v287
        %438 = vmatpush1.msra.mxu0 %v286
        %439 = vmatprep.subr.mxu0 %v283
        %440 = vmatpush1.msra.mxu0 %v282
        %441 = vmatprep.subr.mxu0 %v279
        %442 = vmatpush1.msra.mxu0 %v278
        %443 = vmatprep.subr.mxu0 0.0
        %444 = vmatpush2.msra.mxu0 0.0
        %445 = vmatprep.subr.mxu0 0.0
        %446 = vmatpush2.msra.mxu0 0.0
        %447 = vmatprep.subr.mxu0 0.0
        %448 = vmatpush2.msra.mxu0 0.0
        %449 = vmatprep.subr.mxu0 0.0
        %450 = vmatpush2.msra.mxu0 0.0
        %451 = vmatprep.subr.mxu0 0.0
        %452 = vmatpush2.msra.mxu0 0.0
        %453 = vmatprep.subr.mxu0 0.0
        %454 = vmatpush2.msra.mxu0 0.0
        %455 = vmatprep.subr.mxu0 0.0
        %456 = vmatpush2.msra.mxu0 0.0
        %457 = vmatprep.subr.mxu0 0.0
        %458 = vmatpush2.msra.mxu0 0.0
        %459 = vmatprep.subr.mxu0 0.0
        %460 = vmatpush2.msra.mxu0 0.0
        %461 = vmatprep.subr.mxu0 0.0
        %462 = vmatpush2.msra.mxu0 0.0
        %463 = vmatprep.subr.mxu0 0.0
        %464 = vmatpush2.msra.mxu0 0.0
        %465 = vmatprep.subr.mxu0 0.0
        %466 = vmatpush2.msra.mxu0 0.0
        %467 = vmatprep.subr.mxu0 0.0
        %468 = vmatpush2.msra.mxu0 0.0
        %469 = vmatprep.subr.mxu0 0.0
        %470 = vmatpush2.msra.mxu0 0.0
        %471 = vmatprep.subr.mxu0 0.0
        %472 = vmatpush2.msra.mxu0 0.0
        %473 = vmatprep.subr.mxu0 0.0
        %474 = vmatpush2.msra.mxu0 0.0
        %475 = vmatprep.mubr.f32.mxu0 0.0
        %476 = vmatmul.mubr.f32.gmra.mxu0 %v274
        %v477 = vpop.f32.mrf.mxu0
        %v478 = vadd.f32 0.0, %v477
        %v479 = vpop.f32.mrf.mxu0
        %v480 = vadd.f32 0.0, %v479
        %481 = vdwg.mxu0
        %482 = vmatprep.subr.mxu0 %v270
        %483 = vmatpush1.msra.mxu0 %v269
        %484 = vmatprep.subr.mxu0 %v266
        %485 = vmatpush1.msra.mxu0 %v265
        %486 = vmatprep.subr.mxu0 %v262
        %487 = vmatpush1.msra.mxu0 %v261
        %488 = vmatprep.subr.mxu0 %v258
        %489 = vmatpush1.msra.mxu0 %v257
        %490 = vmatprep.subr.mxu0 %v254
        %491 = vmatpush1.msra.mxu0 %v253
        %492 = vmatprep.subr.mxu0 %v250
        %493 = vmatpush1.msra.mxu0 %v249
        %494 = vmatprep.subr.mxu0 %v246
        %495 = vmatpush1.msra.mxu0 %v245
        %496 = vmatprep.subr.mxu0 %v242
        %497 = vmatpush1.msra.mxu0 %v241
        %498 = vmatprep.subr.mxu0 %v238
        %499 = vmatpush1.msra.mxu0 %v237
        %500 = vmatprep.subr.mxu0 %v234
        %501 = vmatpush1.msra.mxu0 %v233
        %502 = vmatprep.subr.mxu0 %v230
        %503 = vmatpush1.msra.mxu0 %v229
        %504 = vmatprep.subr.mxu0 %v226
        %505 = vmatpush1.msra.mxu0 %v225
        %506 = vmatprep.subr.mxu0 %v222
        %507 = vmatpush1.msra.mxu0 %v221
        %508 = vmatprep.subr.mxu0 %v218
        %509 = vmatpush1.msra.mxu0 %v217
        %510 = vmatprep.subr.mxu0 %v214
        %511 = vmatpush1.msra.mxu0 %v213
        %512 = vmatprep.subr.mxu0 %v210
        %513 = vmatpush1.msra.mxu0 %v209
        %514 = vmatprep.subr.mxu0 0.0
        %515 = vmatpush2.msra.mxu0 0.0
        %516 = vmatprep.subr.mxu0 0.0
        %517 = vmatpush2.msra.mxu0 0.0
        %518 = vmatprep.subr.mxu0 0.0
        %519 = vmatpush2.msra.mxu0 0.0
        %520 = vmatprep.subr.mxu0 0.0
        %521 = vmatpush2.msra.mxu0 0.0
        %522 = vmatprep.subr.mxu0 0.0
        %523 = vmatpush2.msra.mxu0 0.0
        %524 = vmatprep.subr.mxu0 0.0
        %525 = vmatpush2.msra.mxu0 0.0
        %526 = vmatprep.subr.mxu0 0.0
        %527 = vmatpush2.msra.mxu0 0.0
        %528 = vmatprep.subr.mxu0 0.0
        %529 = vmatpush2.msra.mxu0 0.0
        %530 = vmatprep.subr.mxu0 0.0
        %531 = vmatpush2.msra.mxu0 0.0
        %532 = vmatprep.subr.mxu0 0.0
        %533 = vmatpush2.msra.mxu0 0.0
        %534 = vmatprep.subr.mxu0 0.0
        %535 = vmatpush2.msra.mxu0 0.0
        %536 = vmatprep.subr.mxu0 0.0
        %537 = vmatpush2.msra.mxu0 0.0
        %538 = vmatprep.subr.mxu0 0.0
        %539 = vmatpush2.msra.mxu0 0.0
        %540 = vmatprep.subr.mxu0 0.0
        %541 = vmatpush2.msra.mxu0 0.0
        %542 = vmatprep.subr.mxu0 0.0
        %543 = vmatpush2.msra.mxu0 0.0
        %544 = vmatprep.subr.mxu0 0.0
        %545 = vmatpush2.msra.mxu0 0.0
        %546 = vmatprep.mubr.f32.mxu0 0.0
        %547 = vmatmul.mubr.f32.gmra.mxu0 %v208
        %v548 = vpop.f32.mrf.mxu0
        %v549 = vadd.f32 %v407, %v548
        %v550 = vpop.f32.mrf.mxu0
        %v551 = vadd.f32 %v409, %v550
        %552 = vdwg.mxu0
        %553 = vmatprep.subr.mxu0 %v272
        %554 = vmatpush1.msra.mxu0 %v271
        %555 = vmatprep.subr.mxu0 %v268
        %556 = vmatpush1.msra.mxu0 %v267
        %557 = vmatprep.subr.mxu0 %v264
        %558 = vmatpush1.msra.mxu0 %v263
        %559 = vmatprep.subr.mxu0 %v260
        %560 = vmatpush1.msra.mxu0 %v259
        %561 = vmatprep.subr.mxu0 %v256
        %562 = vmatpush1.msra.mxu0 %v255
        %563 = vmatprep.subr.mxu0 %v252
        %564 = vmatpush1.msra.mxu0 %v251
        %565 = vmatprep.subr.mxu0 %v248
        %566 = vmatpush1.msra.mxu0 %v247
        %567 = vmatprep.subr.mxu0 %v244
        %568 = vmatpush1.msra.mxu0 %v243
        %569 = vmatprep.subr.mxu0 %v240
        %570 = vmatpush1.msra.mxu0 %v239
        %571 = vmatprep.subr.mxu0 %v236
        %572 = vmatpush1.msra.mxu0 %v235
        %573 = vmatprep.subr.mxu0 %v232
        %574 = vmatpush1.msra.mxu0 %v231
        %575 = vmatprep.subr.mxu0 %v228
        %576 = vmatpush1.msra.mxu0 %v227
        %577 = vmatprep.subr.mxu0 %v224
        %578 = vmatpush1.msra.mxu0 %v223
        %579 = vmatprep.subr.mxu0 %v220
        %580 = vmatpush1.msra.mxu0 %v219
        %581 = vmatprep.subr.mxu0 %v216
        %582 = vmatpush1.msra.mxu0 %v215
        %583 = vmatprep.subr.mxu0 %v212
        %584 = vmatpush1.msra.mxu0 %v211
        %585 = vmatprep.subr.mxu0 0.0
        %586 = vmatpush2.msra.mxu0 0.0
        %587 = vmatprep.subr.mxu0 0.0
        %588 = vmatpush2.msra.mxu0 0.0
        %589 = vmatprep.subr.mxu0 0.0
        %590 = vmatpush2.msra.mxu0 0.0
        %591 = vmatprep.subr.mxu0 0.0
        %592 = vmatpush2.msra.mxu0 0.0
        %593 = vmatprep.subr.mxu0 0.0
        %594 = vmatpush2.msra.mxu0 0.0
        %595 = vmatprep.subr.mxu0 0.0
        %596 = vmatpush2.msra.mxu0 0.0
        %597 = vmatprep.subr.mxu0 0.0
        %598 = vmatpush2.msra.mxu0 0.0
        %599 = vmatprep.subr.mxu0 0.0
        %600 = vmatpush2.msra.mxu0 0.0
        %601 = vmatprep.subr.mxu0 0.0
        %602 = vmatpush2.msra.mxu0 0.0
        %603 = vmatprep.subr.mxu0 0.0
        %604 = vmatpush2.msra.mxu0 0.0
        %605 = vmatprep.subr.mxu0 0.0
        %606 = vmatpush2.msra.mxu0 0.0
        %607 = vmatprep.subr.mxu0 0.0
        %608 = vmatpush2.msra.mxu0 0.0
        %609 = vmatprep.subr.mxu0 0.0
        %610 = vmatpush2.msra.mxu0 0.0
        %611 = vmatprep.subr.mxu0 0.0
        %612 = vmatpush2.msra.mxu0 0.0
        %613 = vmatprep.subr.mxu0 0.0
        %614 = vmatpush2.msra.mxu0 0.0
        %615 = vmatprep.subr.mxu0 0.0
        %616 = vmatpush2.msra.mxu0 0.0
        %617 = vmatprep.mubr.f32.mxu0 0.0
        %618 = vmatmul.mubr.f32.gmra.mxu0 %v208
        %v619 = vpop.f32.mrf.mxu0
        %v620 = vadd.f32 %v478, %v619
        %v621 = vpop.f32.mrf.mxu0
        %v622 = vadd.f32 %v480, %v621
        %623 = vdwg.mxu0
        %s624 = scalar_lea.vmem %s186, 4 [#allocation5]
        %v625 = vld [vmem:[%s624] sm:$0x3]
        %s626 = scalar_lea.vmem [#allocation2], 1024
        %v627 = vld [vmem:[%s626] sm:$0xff]
        %v628 = vld [vmem:[%s626 + $0x8] sm:$0xff]
        %v629 = vld [vmem:[%s626 + $0x10] sm:$0xff]
        %v630 = vld [vmem:[%s626 + $0x18] sm:$0xff]
        %v631 = vld [vmem:[%s626 + $0x20] sm:$0xff]
        %v632 = vld [vmem:[%s626 + $0x28] sm:$0xff]
        %v633 = vld [vmem:[%s626 + $0x30] sm:$0xff]
        %v634 = vld [vmem:[%s626 + $0x38] sm:$0xff]
        %v635 = vld [vmem:[%s626 + $0x40] sm:$0xff]
        %v636 = vld [vmem:[%s626 + $0x48] sm:$0xff]
        %v637 = vld [vmem:[%s626 + $0x50] sm:$0xff]
        %v638 = vld [vmem:[%s626 + $0x58] sm:$0xff]
        %v639 = vld [vmem:[%s626 + $0x60] sm:$0xff]
        %v640 = vld [vmem:[%s626 + $0x68] sm:$0xff]
        %v641 = vld [vmem:[%s626 + $0x70] sm:$0xff]
        %v642 = vld [vmem:[%s626 + $0x78] sm:$0xff]
        %v643 = vld [vmem:[%s626 + $0x80] sm:$0xff]
        %v644 = vld [vmem:[%s626 + $0x88] sm:$0xff]
        %v645 = vld [vmem:[%s626 + $0x90] sm:$0xff]
        %v646 = vld [vmem:[%s626 + $0x98] sm:$0xff]
        %v647 = vld [vmem:[%s626 + $0xa0] sm:$0xff]
        %v648 = vld [vmem:[%s626 + $0xa8] sm:$0xff]
        %v649 = vld [vmem:[%s626 + $0xb0] sm:$0xff]
        %v650 = vld [vmem:[%s626 + $0xb8] sm:$0xff]
        %v651 = vld [vmem:[%s626 + $0xc0] sm:$0xff]
        %v652 = vld [vmem:[%s626 + $0xc8] sm:$0xff]
        %v653 = vld [vmem:[%s626 + $0xd0] sm:$0xff]
        %v654 = vld [vmem:[%s626 + $0xd8] sm:$0xff]
        %v655 = vld [vmem:[%s626 + $0xe0] sm:$0xff]
        %v656 = vld [vmem:[%s626 + $0xe8] sm:$0xff]
        %v657 = vld [vmem:[%s626 + $0xf0] sm:$0xff]
        %v658 = vld [vmem:[%s626 + $0xf8] sm:$0xff]
        %v659 = vld [vmem:[%s626 + $0x100] sm:$0xff]
        %v660 = vld [vmem:[%s626 + $0x108] sm:$0xff]
        %v661 = vld [vmem:[%s626 + $0x110] sm:$0xff]
        %v662 = vld [vmem:[%s626 + $0x118] sm:$0xff]
        %v663 = vld [vmem:[%s626 + $0x120] sm:$0xff]
        %v664 = vld [vmem:[%s626 + $0x128] sm:$0xff]
        %v665 = vld [vmem:[%s626 + $0x130] sm:$0xff]
        %v666 = vld [vmem:[%s626 + $0x138] sm:$0xff]
        %v667 = vld [vmem:[%s626 + $0x140] sm:$0xff]
        %v668 = vld [vmem:[%s626 + $0x148] sm:$0xff]
        %v669 = vld [vmem:[%s626 + $0x150] sm:$0xff]
        %v670 = vld [vmem:[%s626 + $0x158] sm:$0xff]
        %v671 = vld [vmem:[%s626 + $0x160] sm:$0xff]
        %v672 = vld [vmem:[%s626 + $0x168] sm:$0xff]
        %v673 = vld [vmem:[%s626 + $0x170] sm:$0xff]
        %v674 = vld [vmem:[%s626 + $0x178] sm:$0xff]
        %v675 = vld [vmem:[%s626 + $0x180] sm:$0xff]
        %v676 = vld [vmem:[%s626 + $0x188] sm:$0xff]
        %v677 = vld [vmem:[%s626 + $0x190] sm:$0xff]
        %v678 = vld [vmem:[%s626 + $0x198] sm:$0xff]
        %v679 = vld [vmem:[%s626 + $0x1a0] sm:$0xff]
        %v680 = vld [vmem:[%s626 + $0x1a8] sm:$0xff]
        %v681 = vld [vmem:[%s626 + $0x1b0] sm:$0xff]
        %v682 = vld [vmem:[%s626 + $0x1b8] sm:$0xff]
        %v683 = vld [vmem:[%s626 + $0x1c0] sm:$0xff]
        %v684 = vld [vmem:[%s626 + $0x1c8] sm:$0xff]
        %v685 = vld [vmem:[%s626 + $0x1d0] sm:$0xff]
        %v686 = vld [vmem:[%s626 + $0x1d8] sm:$0xff]
        %v687 = vld [vmem:[%s626 + $0x1e0] sm:$0xff]
        %v688 = vld [vmem:[%s626 + $0x1e8] sm:$0xff]
        %v689 = vld [vmem:[%s626 + $0x1f0] sm:$0xff]
        %v690 = vld [vmem:[%s626 + $0x1f8] sm:$0xff]
        %691 = vmatprep.subr.mxu0 %v688
        %692 = vmatpush1.msra.mxu0 %v687
        %693 = vmatprep.subr.mxu0 %v684
        %694 = vmatpush1.msra.mxu0 %v683
        %695 = vmatprep.subr.mxu0 %v680
        %696 = vmatpush1.msra.mxu0 %v679
        %697 = vmatprep.subr.mxu0 %v676
        %698 = vmatpush1.msra.mxu0 %v675
        %699 = vmatprep.subr.mxu0 %v672
        %700 = vmatpush1.msra.mxu0 %v671
        %701 = vmatprep.subr.mxu0 %v668
        %702 = vmatpush1.msra.mxu0 %v667
        %703 = vmatprep.subr.mxu0 %v664
        %704 = vmatpush1.msra.mxu0 %v663
        %705 = vmatprep.subr.mxu0 %v660
        %706 = vmatpush1.msra.mxu0 %v659
        %707 = vmatprep.subr.mxu0 %v656
        %708 = vmatpush1.msra.mxu0 %v655
        %709 = vmatprep.subr.mxu0 %v652
        %710 = vmatpush1.msra.mxu0 %v651
        %711 = vmatprep.subr.mxu0 %v648
        %712 = vmatpush1.msra.mxu0 %v647
        %713 = vmatprep.subr.mxu0 %v644
        %714 = vmatpush1.msra.mxu0 %v643
        %715 = vmatprep.subr.mxu0 %v640
        %716 = vmatpush1.msra.mxu0 %v639
        %717 = vmatprep.subr.mxu0 %v636
        %718 = vmatpush1.msra.mxu0 %v635
        %719 = vmatprep.subr.mxu0 %v632
        %720 = vmatpush1.msra.mxu0 %v631
        %721 = vmatprep.subr.mxu0 %v628
        %722 = vmatpush1.msra.mxu0 %v627
        %723 = vmatprep.subr.mxu0 0.0
        %724 = vmatpush2.msra.mxu0 0.0
        %725 = vmatprep.subr.mxu0 0.0
        %726 = vmatpush2.msra.mxu0 0.0
        %727 = vmatprep.subr.mxu0 0.0
        %728 = vmatpush2.msra.mxu0 0.0
        %729 = vmatprep.subr.mxu0 0.0
        %730 = vmatpush2.msra.mxu0 0.0
        %731 = vmatprep.subr.mxu0 0.0
        %732 = vmatpush2.msra.mxu0 0.0
        %733 = vmatprep.subr.mxu0 0.0
        %734 = vmatpush2.msra.mxu0 0.0
        %735 = vmatprep.subr.mxu0 0.0
        %736 = vmatpush2.msra.mxu0 0.0
        %737 = vmatprep.subr.mxu0 0.0
        %738 = vmatpush2.msra.mxu0 0.0
        %739 = vmatprep.subr.mxu0 0.0
        %740 = vmatpush2.msra.mxu0 0.0
        %741 = vmatprep.subr.mxu0 0.0
        %742 = vmatpush2.msra.mxu0 0.0
        %743 = vmatprep.subr.mxu0 0.0
        %744 = vmatpush2.msra.mxu0 0.0
        %745 = vmatprep.subr.mxu0 0.0
        %746 = vmatpush2.msra.mxu0 0.0
        %747 = vmatprep.subr.mxu0 0.0
        %748 = vmatpush2.msra.mxu0 0.0
        %749 = vmatprep.subr.mxu0 0.0
        %750 = vmatpush2.msra.mxu0 0.0
        %751 = vmatprep.subr.mxu0 0.0
        %752 = vmatpush2.msra.mxu0 0.0
        %753 = vmatprep.subr.mxu0 0.0
        %754 = vmatpush2.msra.mxu0 0.0
        %755 = vmatprep.mubr.f32.mxu0 0.0
        %756 = vmatmul.mubr.f32.gmra.mxu0 %v625
        %v757 = vpop.f32.mrf.mxu0
        %v758 = vadd.f32 0.0, %v757
        %v759 = vpop.f32.mrf.mxu0
        %v760 = vadd.f32 0.0, %v759
        %761 = vdwg.mxu0
        %762 = vmatprep.subr.mxu0 %v690
        %763 = vmatpush1.msra.mxu0 %v689
        %764 = vmatprep.subr.mxu0 %v686
        %765 = vmatpush1.msra.mxu0 %v685
        %766 = vmatprep.subr.mxu0 %v682
        %767 = vmatpush1.msra.mxu0 %v681
        %768 = vmatprep.subr.mxu0 %v678
        %769 = vmatpush1.msra.mxu0 %v677
        %770 = vmatprep.subr.mxu0 %v674
        %771 = vmatpush1.msra.mxu0 %v673
        %772 = vmatprep.subr.mxu0 %v670
        %773 = vmatpush1.msra.mxu0 %v669
        %774 = vmatprep.subr.mxu0 %v666
        %775 = vmatpush1.msra.mxu0 %v665
        %776 = vmatprep.subr.mxu0 %v662
        %777 = vmatpush1.msra.mxu0 %v661
        %778 = vmatprep.subr.mxu0 %v658
        %779 = vmatpush1.msra.mxu0 %v657
        %780 = vmatprep.subr.mxu0 %v654
        %781 = vmatpush1.msra.mxu0 %v653
        %782 = vmatprep.subr.mxu0 %v650
        %783 = vmatpush1.msra.mxu0 %v649
        %784 = vmatprep.subr.mxu0 %v646
        %785 = vmatpush1.msra.mxu0 %v645
        %786 = vmatprep.subr.mxu0 %v642
        %787 = vmatpush1.msra.mxu0 %v641
        %788 = vmatprep.subr.mxu0 %v638
        %789 = vmatpush1.msra.mxu0 %v637
        %790 = vmatprep.subr.mxu0 %v634
        %791 = vmatpush1.msra.mxu0 %v633
        %792 = vmatprep.subr.mxu0 %v630
        %793 = vmatpush1.msra.mxu0 %v629
        %794 = vmatprep.subr.mxu0 0.0
        %795 = vmatpush2.msra.mxu0 0.0
        %796 = vmatprep.subr.mxu0 0.0
        %797 = vmatpush2.msra.mxu0 0.0
        %798 = vmatprep.subr.mxu0 0.0
        %799 = vmatpush2.msra.mxu0 0.0
        %800 = vmatprep.subr.mxu0 0.0
        %801 = vmatpush2.msra.mxu0 0.0
        %802 = vmatprep.subr.mxu0 0.0
        %803 = vmatpush2.msra.mxu0 0.0
        %804 = vmatprep.subr.mxu0 0.0
        %805 = vmatpush2.msra.mxu0 0.0
        %806 = vmatprep.subr.mxu0 0.0
        %807 = vmatpush2.msra.mxu0 0.0
        %808 = vmatprep.subr.mxu0 0.0
        %809 = vmatpush2.msra.mxu0 0.0
        %810 = vmatprep.subr.mxu0 0.0
        %811 = vmatpush2.msra.mxu0 0.0
        %812 = vmatprep.subr.mxu0 0.0
        %813 = vmatpush2.msra.mxu0 0.0
        %814 = vmatprep.subr.mxu0 0.0
        %815 = vmatpush2.msra.mxu0 0.0
        %816 = vmatprep.subr.mxu0 0.0
        %817 = vmatpush2.msra.mxu0 0.0
        %818 = vmatprep.subr.mxu0 0.0
        %819 = vmatpush2.msra.mxu0 0.0
        %820 = vmatprep.subr.mxu0 0.0
        %821 = vmatpush2.msra.mxu0 0.0
        %822 = vmatprep.subr.mxu0 0.0
        %823 = vmatpush2.msra.mxu0 0.0
        %824 = vmatprep.subr.mxu0 0.0
        %825 = vmatpush2.msra.mxu0 0.0
        %826 = vmatprep.mubr.f32.mxu0 0.0
        %827 = vmatmul.mubr.f32.gmra.mxu0 %v625
        %v828 = vpop.f32.mrf.mxu0
        %v829 = vadd.f32 0.0, %v828
        %v830 = vpop.f32.mrf.mxu0
        %v831 = vadd.f32 0.0, %v830
        %832 = vdwg.mxu0
        %v833 = vadd.f32 %v549, %v758
        %v834 = vadd.f32 %v551, %v760
        %v835 = vadd.f32 %v620, %v829
        %v836 = vadd.f32 %v622, %v831
        %s837 = scalar_lea.vmem %s186, 6 [#allocation5]
        %v838 = vld [vmem:[%s837] sm:$0x3]
        %s839 = scalar_lea.vmem [#allocation2], 1536
        %v840 = vld [vmem:[%s839] sm:$0xff]
        %v841 = vld [vmem:[%s839 + $0x8] sm:$0xff]
        %v842 = vld [vmem:[%s839 + $0x10] sm:$0xff]
        %v843 = vld [vmem:[%s839 + $0x18] sm:$0xff]
        %v844 = vld [vmem:[%s839 + $0x20] sm:$0xff]
        %v845 = vld [vmem:[%s839 + $0x28] sm:$0xff]
        %v846 = vld [vmem:[%s839 + $0x30] sm:$0xff]
        %v847 = vld [vmem:[%s839 + $0x38] sm:$0xff]
        %v848 = vld [vmem:[%s839 + $0x40] sm:$0xff]
        %v849 = vld [vmem:[%s839 + $0x48] sm:$0xff]
        %v850 = vld [vmem:[%s839 + $0x50] sm:$0xff]
        %v851 = vld [vmem:[%s839 + $0x58] sm:$0xff]
        %v852 = vld [vmem:[%s839 + $0x60] sm:$0xff]
        %v853 = vld [vmem:[%s839 + $0x68] sm:$0xff]
        %v854 = vld [vmem:[%s839 + $0x70] sm:$0xff]
        %v855 = vld [vmem:[%s839 + $0x78] sm:$0xff]
        %v856 = vld [vmem:[%s839 + $0x80] sm:$0xff]
        %v857 = vld [vmem:[%s839 + $0x88] sm:$0xff]
        %v858 = vld [vmem:[%s839 + $0x90] sm:$0xff]
        %v859 = vld [vmem:[%s839 + $0x98] sm:$0xff]
        %v860 = vld [vmem:[%s839 + $0xa0] sm:$0xff]
        %v861 = vld [vmem:[%s839 + $0xa8] sm:$0xff]
        %v862 = vld [vmem:[%s839 + $0xb0] sm:$0xff]
        %v863 = vld [vmem:[%s839 + $0xb8] sm:$0xff]
        %v864 = vld [vmem:[%s839 + $0xc0] sm:$0xff]
        %v865 = vld [vmem:[%s839 + $0xc8] sm:$0xff]
        %v866 = vld [vmem:[%s839 + $0xd0] sm:$0xff]
        %v867 = vld [vmem:[%s839 + $0xd8] sm:$0xff]
        %v868 = vld [vmem:[%s839 + $0xe0] sm:$0xff]
        %v869 = vld [vmem:[%s839 + $0xe8] sm:$0xff]
        %v870 = vld [vmem:[%s839 + $0xf0] sm:$0xff]
        %v871 = vld [vmem:[%s839 + $0xf8] sm:$0xff]
        %v872 = vld [vmem:[%s839 + $0x100] sm:$0xff]
        %v873 = vld [vmem:[%s839 + $0x108] sm:$0xff]
        %v874 = vld [vmem:[%s839 + $0x110] sm:$0xff]
        %v875 = vld [vmem:[%s839 + $0x118] sm:$0xff]
        %v876 = vld [vmem:[%s839 + $0x120] sm:$0xff]
        %v877 = vld [vmem:[%s839 + $0x128] sm:$0xff]
        %v878 = vld [vmem:[%s839 + $0x130] sm:$0xff]
        %v879 = vld [vmem:[%s839 + $0x138] sm:$0xff]
        %v880 = vld [vmem:[%s839 + $0x140] sm:$0xff]
        %v881 = vld [vmem:[%s839 + $0x148] sm:$0xff]
        %v882 = vld [vmem:[%s839 + $0x150] sm:$0xff]
        %v883 = vld [vmem:[%s839 + $0x158] sm:$0xff]
        %v884 = vld [vmem:[%s839 + $0x160] sm:$0xff]
        %v885 = vld [vmem:[%s839 + $0x168] sm:$0xff]
        %v886 = vld [vmem:[%s839 + $0x170] sm:$0xff]
        %v887 = vld [vmem:[%s839 + $0x178] sm:$0xff]
        %v888 = vld [vmem:[%s839 + $0x180] sm:$0xff]
        %v889 = vld [vmem:[%s839 + $0x188] sm:$0xff]
        %v890 = vld [vmem:[%s839 + $0x190] sm:$0xff]
        %v891 = vld [vmem:[%s839 + $0x198] sm:$0xff]
        %v892 = vld [vmem:[%s839 + $0x1a0] sm:$0xff]
        %v893 = vld [vmem:[%s839 + $0x1a8] sm:$0xff]
        %v894 = vld [vmem:[%s839 + $0x1b0] sm:$0xff]
        %v895 = vld [vmem:[%s839 + $0x1b8] sm:$0xff]
        %v896 = vld [vmem:[%s839 + $0x1c0] sm:$0xff]
        %v897 = vld [vmem:[%s839 + $0x1c8] sm:$0xff]
        %v898 = vld [vmem:[%s839 + $0x1d0] sm:$0xff]
        %v899 = vld [vmem:[%s839 + $0x1d8] sm:$0xff]
        %v900 = vld [vmem:[%s839 + $0x1e0] sm:$0xff]
        %v901 = vld [vmem:[%s839 + $0x1e8] sm:$0xff]
        %v902 = vld [vmem:[%s839 + $0x1f0] sm:$0xff]
        %v903 = vld [vmem:[%s839 + $0x1f8] sm:$0xff]
        %904 = vmatprep.subr.mxu0 %v901
        %905 = vmatpush1.msra.mxu0 %v900
        %906 = vmatprep.subr.mxu0 %v897
        %907 = vmatpush1.msra.mxu0 %v896
        %908 = vmatprep.subr.mxu0 %v893
        %909 = vmatpush1.msra.mxu0 %v892
        %910 = vmatprep.subr.mxu0 %v889
        %911 = vmatpush1.msra.mxu0 %v888
        %912 = vmatprep.subr.mxu0 %v885
        %913 = vmatpush1.msra.mxu0 %v884
        %914 = vmatprep.subr.mxu0 %v881
        %915 = vmatpush1.msra.mxu0 %v880
        %916 = vmatprep.subr.mxu0 %v877
        %917 = vmatpush1.msra.mxu0 %v876
        %918 = vmatprep.subr.mxu0 %v873
        %919 = vmatpush1.msra.mxu0 %v872
        %920 = vmatprep.subr.mxu0 %v869
        %921 = vmatpush1.msra.mxu0 %v868
        %922 = vmatprep.subr.mxu0 %v865
        %923 = vmatpush1.msra.mxu0 %v864
        %924 = vmatprep.subr.mxu0 %v861
        %925 = vmatpush1.msra.mxu0 %v860
        %926 = vmatprep.subr.mxu0 %v857
        %927 = vmatpush1.msra.mxu0 %v856
        %928 = vmatprep.subr.mxu0 %v853
        %929 = vmatpush1.msra.mxu0 %v852
        %930 = vmatprep.subr.mxu0 %v849
        %931 = vmatpush1.msra.mxu0 %v848
        %932 = vmatprep.subr.mxu0 %v845
        %933 = vmatpush1.msra.mxu0 %v844
        %934 = vmatprep.subr.mxu0 %v841
        %935 = vmatpush1.msra.mxu0 %v840
        %936 = vmatprep.subr.mxu0 0.0
        %937 = vmatpush2.msra.mxu0 0.0
        %938 = vmatprep.subr.mxu0 0.0
        %939 = vmatpush2.msra.mxu0 0.0
        %940 = vmatprep.subr.mxu0 0.0
        %941 = vmatpush2.msra.mxu0 0.0
        %942 = vmatprep.subr.mxu0 0.0
        %943 = vmatpush2.msra.mxu0 0.0
        %944 = vmatprep.subr.mxu0 0.0
        %945 = vmatpush2.msra.mxu0 0.0
        %946 = vmatprep.subr.mxu0 0.0
        %947 = vmatpush2.msra.mxu0 0.0
        %948 = vmatprep.subr.mxu0 0.0
        %949 = vmatpush2.msra.mxu0 0.0
        %950 = vmatprep.subr.mxu0 0.0
        %951 = vmatpush2.msra.mxu0 0.0
        %952 = vmatprep.subr.mxu0 0.0
        %953 = vmatpush2.msra.mxu0 0.0
        %954 = vmatprep.subr.mxu0 0.0
        %955 = vmatpush2.msra.mxu0 0.0
        %956 = vmatprep.subr.mxu0 0.0
        %957 = vmatpush2.msra.mxu0 0.0
        %958 = vmatprep.subr.mxu0 0.0
        %959 = vmatpush2.msra.mxu0 0.0
        %960 = vmatprep.subr.mxu0 0.0
        %961 = vmatpush2.msra.mxu0 0.0
        %962 = vmatprep.subr.mxu0 0.0
        %963 = vmatpush2.msra.mxu0 0.0
        %964 = vmatprep.subr.mxu0 0.0
        %965 = vmatpush2.msra.mxu0 0.0
        %966 = vmatprep.subr.mxu0 0.0
        %967 = vmatpush2.msra.mxu0 0.0
        %968 = vmatprep.mubr.f32.mxu0 0.0
        %969 = vmatmul.mubr.f32.gmra.mxu0 %v838
        %v970 = vpop.f32.mrf.mxu0
        %v971 = vadd.f32 0.0, %v970
        %v972 = vpop.f32.mrf.mxu0
        %v973 = vadd.f32 0.0, %v972
        %974 = vdwg.mxu0
        %975 = vmatprep.subr.mxu0 %v903
        %976 = vmatpush1.msra.mxu0 %v902
        %977 = vmatprep.subr.mxu0 %v899
        %978 = vmatpush1.msra.mxu0 %v898
        %979 = vmatprep.subr.mxu0 %v895
        %980 = vmatpush1.msra.mxu0 %v894
        %981 = vmatprep.subr.mxu0 %v891
        %982 = vmatpush1.msra.mxu0 %v890
        %983 = vmatprep.subr.mxu0 %v887
        %984 = vmatpush1.msra.mxu0 %v886
        %985 = vmatprep.subr.mxu0 %v883
        %986 = vmatpush1.msra.mxu0 %v882
        %987 = vmatprep.subr.mxu0 %v879
        %988 = vmatpush1.msra.mxu0 %v878
        %989 = vmatprep.subr.mxu0 %v875
        %990 = vmatpush1.msra.mxu0 %v874
        %991 = vmatprep.subr.mxu0 %v871
        %992 = vmatpush1.msra.mxu0 %v870
        %993 = vmatprep.subr.mxu0 %v867
        %994 = vmatpush1.msra.mxu0 %v866
        %995 = vmatprep.subr.mxu0 %v863
        %996 = vmatpush1.msra.mxu0 %v862
        %997 = vmatprep.subr.mxu0 %v859
        %998 = vmatpush1.msra.mxu0 %v858
        %999 = vmatprep.subr.mxu0 %v855
        %1000 = vmatpush1.msra.mxu0 %v854
        %1001 = vmatprep.subr.mxu0 %v851
        %1002 = vmatpush1.msra.mxu0 %v850
        %1003 = vmatprep.subr.mxu0 %v847
        %1004 = vmatpush1.msra.mxu0 %v846
        %1005 = vmatprep.subr.mxu0 %v843
        %1006 = vmatpush1.msra.mxu0 %v842
        %1007 = vmatprep.subr.mxu0 0.0
        %1008 = vmatpush2.msra.mxu0 0.0
        %1009 = vmatprep.subr.mxu0 0.0
        %1010 = vmatpush2.msra.mxu0 0.0
        %1011 = vmatprep.subr.mxu0 0.0
        %1012 = vmatpush2.msra.mxu0 0.0
        %1013 = vmatprep.subr.mxu0 0.0
        %1014 = vmatpush2.msra.mxu0 0.0
        %1015 = vmatprep.subr.mxu0 0.0
        %1016 = vmatpush2.msra.mxu0 0.0
        %1017 = vmatprep.subr.mxu0 0.0
        %1018 = vmatpush2.msra.mxu0 0.0
        %1019 = vmatprep.subr.mxu0 0.0
        %1020 = vmatpush2.msra.mxu0 0.0
        %1021 = vmatprep.subr.mxu0 0.0
        %1022 = vmatpush2.msra.mxu0 0.0
        %1023 = vmatprep.subr.mxu0 0.0
        %1024 = vmatpush2.msra.mxu0 0.0
        %1025 = vmatprep.subr.mxu0 0.0
        %1026 = vmatpush2.msra.mxu0 0.0
        %1027 = vmatprep.subr.mxu0 0.0
        %1028 = vmatpush2.msra.mxu0 0.0
        %1029 = vmatprep.subr.mxu0 0.0
        %1030 = vmatpush2.msra.mxu0 0.0
        %1031 = vmatprep.subr.mxu0 0.0
        %1032 = vmatpush2.msra.mxu0 0.0
        %1033 = vmatprep.subr.mxu0 0.0
        %1034 = vmatpush2.msra.mxu0 0.0
        %1035 = vmatprep.subr.mxu0 0.0
        %1036 = vmatpush2.msra.mxu0 0.0
        %1037 = vmatprep.subr.mxu0 0.0
        %1038 = vmatpush2.msra.mxu0 0.0
        %1039 = vmatprep.mubr.f32.mxu0 0.0
        %1040 = vmatmul.mubr.f32.gmra.mxu0 %v838
        %v1041 = vpop.f32.mrf.mxu0
        %v1042 = vadd.f32 0.0, %v1041
        %v1043 = vpop.f32.mrf.mxu0
        %v1044 = vadd.f32 0.0, %v1043
        %1045 = vdwg.mxu0
        %v1046 = vadd.f32 %v833, %v971
        %v1047 = vadd.f32 %v834, %v973
        %v1048 = vadd.f32 %v835, %v1042
        %v1049 = vadd.f32 %v836, %v1044
        %v1054 = vcombine.low %v1046, %v1047
        %v1055 = vcombine.low %v1048, %v1049
        %v1057 = vunpack.c.l.s4 1983009808
        %v1058 = vunpack.c.0.s8 %v1057
        %v1059 = vlaneseq
        %v1060 = vshrl.u32 %v1059, 7
        %v1061 = vsub.s32 %v1058, %v1060
        %v1062 = vrot.slane %v1054, %v1061
        %v1064 = vunpack.c.l.s4 1983009808
        %v1065 = vunpack.c.0.s8 %v1064
        %v1066 = vlaneseq
        %v1067 = vshrl.u32 %v1066, 7
        %v1068 = vsub.s32 %v1065, %v1067
        %v1069 = vrot.slane %v1055, %v1068
        %v1070 = vcombine.low %v1062, %v1069
        %1072 = vst [vmem:[%s206] sm:$0xff] %v1070
        %s1073 = sand.u32 %s102, 1
        %s1074 = scalar_lea.sflag [#allocation4], %s1073
        %s1075 = sand.u32 %s102, 1
        %s1076 = smul.addr %s1075, 8
        %s1077 = scalar_lea.vmem [#allocation7], %s1076
        // Predicated region
        $region37: #{tpu_custom_call.1} parent=27 // pred_check
          %p1078 = pneg %p112
        $region38: #{tpu_custom_call.1} parent=27 // pred_check_branch
          %1080 = sbr.rel (%p1078) target = $region40
        $region39: #{tpu_custom_call.1} parent=27 // pred_region
          %s1082 = ssub.s32 128, 128
          %1083 = vsyncadd %s1074, %s1082
          %s1084 = smul.addr %s27, 4
          %s1085 = smul.addr %s26, 4
          %s1086 = sadd.s32 %s1084, %s1085
          %s1087 = smul.addr %s25, 16
          %s1088 = sadd.s32 %s1086, %s1087
          %s1089 = smul.addr %s1088, 32
          %s1090 = scalar_lea.hbm %s2, %s1089
          %s1092 = sshll.u32 %s1077, 4
          %s1093 = int_to_ptr.vmem [resolvable:$true] %s1092
          %1095 = dma.vmem_to_hbm [thread:$0]  %s1093, 128, %s1090, %s1074
        $region40: #{tpu_custom_call.1} parent=27 // pred_fallthru
          _
      $region28: #{tpu_custom_call.1} parent=5 // pred_fallthru
        _
      %p1096 = scmp.le.s32.totalorder 2, %s15
      // Predicated region
      $region41: #{tpu_custom_call.1} parent=5 // pred_check
        %p1097 = pneg %p1096
      $region42: #{tpu_custom_call.1} parent=5 // pred_check_branch
        %1099 = sbr.rel (%p1097) target = $region44
      $region43: #{tpu_custom_call.1} parent=5 // pred_region
        %s1100 = ssub.s32 %s15, 2
        // Predicated region
        $region45: #{tpu_custom_call.1} parent=43 // pred_check
          %p1101 = pneg %p118
        $region46: #{tpu_custom_call.1} parent=43 // pred_check_branch
          %1103 = sbr.rel (%p1101) target = $region48
        $region47: #{tpu_custom_call.1} parent=43 // pred_region
          %s1104 = sand.u32 %s103, 1
          %s1105 = scalar_lea.sflag [#allocation4], %s1104
          %s1106 = sand.u32 %s103, 1
          %s1107 = smul.addr %s1106, 8
          %s1108 = scalar_lea.vmem [#allocation7], %s1107
          %1109 = dma.done %s1105, 128
        $region48: #{tpu_custom_call.1} parent=43 // pred_fallthru
          _
      $region44: #{tpu_custom_call.1} parent=5 // pred_fallthru
        _
    $region6: #{tpu_custom_call.1} parent=1 // loop_footer
      %s19 = sadd.s32 1, %s15
    $region7: #{tpu_custom_call.1} parent=1 // loop_footer_branch
      %14 = sbr.rel target = $region3
    $region8: #{tpu_custom_call.1} parent=1 // loop_exit
      _
    %1110 = vsyncpa [#allocation3], 1
    %s1111 = scalar_lea.sflag [#allocation3], 1
    %1112 = vsyncpa %s1111, 1
    %1113 = vsyncpa [#allocation6], 1
    %s1114 = scalar_lea.sflag [#allocation6], 1
    %1115 = vsyncpa %s1114, 1
    %1116 = vsyncpa [#allocation4], 1
    %s1117 = scalar_lea.sflag [#allocation4], 1
    %1118 = vsyncpa %s1117, 1

</llo_original>
